<compile_context>
chip_gen: v7x
topology: tpu7x:2x2x1
jax: 0.10.0
libtpu: 0.0.40
codegen_flags: <defaults>
</compile_context>

<pallas_src>
import numpy as np
import jax
import jax.numpy as jnp
from jax.experimental import pallas as pl
from jax.experimental.pallas import tpu as pltpu

# ---------------------------------------------------------------------------
# Network structure (synthetic, deterministic)
# ---------------------------------------------------------------------------
POP_SLICES = {
    "epg": slice(0, 16),
    "pen": slice(16, 32),
    "peg": slice(32, 48),
    "d7":  slice(48, 64),
}
NUM_NEURONS = 64
N_EPG = POP_SLICES["epg"].stop - POP_SLICES["epg"].start
N_PEN = POP_SLICES["pen"].stop - POP_SLICES["pen"].start
HEMI = N_PEN // 2          # hemisphere_length_penalty
N_PAD = 128                # lane-dense padded neuron axis

# Rows of the fused static-parameter tile.
ROW_GAIN, ROW_BIAS, ROW_INVTAU, ROW_PEN_POS, ROW_PEN_NEG = 0, 1, 2, 3, 4


# ---------------------------------------------------------------------------
# Parameter construction (mirrors __init__ / update_parameterizations; glue)
# ---------------------------------------------------------------------------
def build_effective_weights(initial_weights, pop_slices, weight_scale=1.0):
    """sum_k exp(scaling_k) * weight_block_k embedded into an N x N matrix
    (no_interhemispheric_split=True path of _create_weight_blocks)."""
    n = initial_weights.shape[0]
    w = np.zeros((n, n), dtype=np.float32)
    log_scale = np.log(weight_scale)
    for _, pre_sl in pop_slices.items():
        for _, post_sl in pop_slices.items():
            block = initial_weights[pre_sl, post_sl]
            if not np.all(block == 0.0):
                w[pre_sl, post_sl] += np.exp(log_scale) * block
    return w


def build_neuron_property_masks(pop_slices, n, gain_val=1.0, bias_val=0.0,
                                tau_val=0.02):
    """create_gain_bias_time_constant_masks: per-population scalar properties
    broadcast over the neuron vector (gain/tau stored as log, exp'ed here)."""
    gain = np.zeros(n, np.float32)
    bias = np.zeros(n, np.float32)
    tau = np.zeros(n, np.float32)
    for _, sl in pop_slices.items():
        gain[sl] += np.exp(np.log(gain_val))
        bias[sl] += bias_val
        tau[sl] += np.exp(np.log(tau_val))
    return gain, bias, tau


def pack_static_params(w_eff, gain, bias, tau):
    """Build the fused (8,128) parameter tile and the (128,128) padded weight
    matrix ONCE (static structure; not per step).  Padded lanes get inv_tau=0
    so they stay exactly zero through the update."""
    n = NUM_NEURONS
    params = jnp.zeros((8, N_PAD), jnp.float32)
    params = params.at[ROW_GAIN, :n].set(jnp.asarray(gain, jnp.float32))
    params = params.at[ROW_BIAS, :n].set(jnp.asarray(bias, jnp.float32))
    params = params.at[ROW_INVTAU, :n].set(1.0 / jnp.asarray(tau, jnp.float32))
    pen = POP_SLICES["pen"]
    params = params.at[ROW_PEN_POS, pen.start:pen.start + HEMI].set(1.0)
    params = params.at[ROW_PEN_NEG, pen.start + HEMI:pen.stop].set(1.0)
    w_pad = jnp.zeros((N_PAD, N_PAD), jnp.float32).at[:n, :n].set(
        jnp.asarray(w_eff, jnp.float32))
    return params, w_pad


# ---------------------------------------------------------------------------
# Pallas kernel: T Euler steps, grid=(T,), state carried in VMEM scratch
# ---------------------------------------------------------------------------
def ring_attractor_kernel(scal_ref,       # SMEM (4, T): dt, velocity, |v|*exp(vs), landmark_scaling
                          lm_ref,         # VMEM (1, 1, 128): epg-embedded landmarks for step t
                          params_ref,     # VMEM (8, 128): gain/bias/inv_tau/pen masks (resident)
                          w_ref,          # VMEM (128, 128): padded effective weights (resident)
                          state0_ref,     # VMEM (1, 128): initial state (resident)
                          act_out_ref,    # VMEM (1, 1, 128): output activity for step t
                          state_out_ref,  # VMEM (1, 128): final state (resident, written at last step)
                          state_sc):      # VMEM scratch (1, 128): carried state
    t = pl.program_id(0)

    @pl.when(t == 0)
    def _init():
        state_sc[...] = state0_ref[...]

    # Per-step scalars (SMEM, scalar path).
    dt = scal_ref[0, t]
    velocity = scal_ref[1, t]
    vel_mag = scal_ref[2, t]        # |velocity| * exp(velocity_scaling), scalar exp hoisted
    lm_scale = scal_ref[3, t]       # landmark_scaling

    # Static per-neuron rows from the fused parameter tile.
    gain = params_ref[ROW_GAIN:ROW_GAIN + 1, :]
    bias = params_ref[ROW_BIAS:ROW_BIAS + 1, :]
    inv_tau = params_ref[ROW_INVTAU:ROW_INVTAU + 1, :]
    pen_pos = params_ref[ROW_PEN_POS:ROW_PEN_POS + 1, :]
    pen_neg = params_ref[ROW_PEN_NEG:ROW_PEN_NEG + 1, :]

    state = state_sc[...]

    # neuron_activity = ReLU(gain * state + bias)
    activity = jnp.maximum(gain * state + bias, 0.0)

    # weighted_input = activity @ W_eff  (MXU, 128-aligned tile)
    weighted = jnp.dot(activity, w_ref[...], preferred_element_type=jnp.float32)

    # landmark input (zeros outside epg already baked into lm_ref)
    landmark_in = lm_ref[...].reshape(1, N_PAD) * lm_scale

    # velocity input: hemisphere chosen by sign(velocity)
    hemi = jnp.where(velocity > 0.0, pen_pos, pen_neg)
    vel_in = vel_mag * hemi

    # Euler step: divide-by-tau replaced by precomputed inv_tau multiply.
    new_state = state + (-state + vel_in + landmark_in + weighted) * (inv_tau * dt)

    state_sc[...] = new_state
    act_out_ref[...] = jnp.maximum(gain * new_state + bias, 0.0).reshape(1, 1, N_PAD)

    @pl.when(t == pl.num_programs(0) - 1)
    def _final():
        state_out_ref[...] = new_state


# ---------------------------------------------------------------------------
# Wrappers
# ---------------------------------------------------------------------------
def ring_attractor_simulate(step_inputs, state0, params, w_pad,
                            velocity_scaling, landmark_scaling):
    """Run T forward steps in a single pallas_call.

    step_inputs: (T, 2 + N_EPG) rows of [dt, velocity, landmarks...]
    state0:      (NUM_NEURONS,)
    Returns (epg_activity (T, N_EPG), final_state (NUM_NEURONS,)).
    """
    step_inputs = jnp.asarray(step_inputs, jnp.float32)
    T = step_inputs.shape[0]
    n = NUM_NEURONS
    epg = POP_SLICES["epg"]

    dt = step_inputs[:, 0]
    velocity = step_inputs[:, 1]
    landmarks = step_inputs[:, 2:]

    # Scalar exp(velocity_scaling) computed once (not a vector EUP exp per step).
    exp_vs = jnp.exp(jnp.asarray(velocity_scaling, jnp.float32))
    scal = jnp.stack(
        [dt,
         velocity,
         jnp.abs(velocity) * exp_vs,
         jnp.full((T,), jnp.asarray(landmark_scaling, jnp.float32))],
        axis=0).astype(jnp.float32)                       # (4, T), long axis last for SMEM

    # Embed landmarks into epg slots of padded rows, once for the whole trajectory.
    lm_rows = jnp.zeros((T, 1, N_PAD), jnp.float32).at[:, 0, epg].set(landmarks)
    state0_row = jnp.zeros((1, N_PAD), jnp.float32).at[0, :n].set(
        jnp.asarray(state0, jnp.float32))

    act_out, state_out = pl.pallas_call(
        ring_attractor_kernel,
        out_shape=(jax.ShapeDtypeStruct((T, 1, N_PAD), jnp.float32),
                   jax.ShapeDtypeStruct((1, N_PAD), jnp.float32)),
        grid=(T,),
        in_specs=[
            pl.BlockSpec(memory_space=pltpu.MemorySpace.SMEM),      # per-step scalars
            pl.BlockSpec((1, 1, N_PAD), lambda t: (t, 0, 0)),       # per-step landmarks
            pl.BlockSpec((8, N_PAD), lambda t: (0, 0)),             # fused params (resident)
            pl.BlockSpec((N_PAD, N_PAD), lambda t: (0, 0)),         # weights (resident)
            pl.BlockSpec((1, N_PAD), lambda t: (0, 0)),             # initial state (resident)
        ],
        out_specs=(
            pl.BlockSpec((1, 1, N_PAD), lambda t: (t, 0, 0)),       # per-step activity
            pl.BlockSpec((1, N_PAD), lambda t: (0, 0)),             # final state (resident)
        ),
        scratch_shapes=[pltpu.VMEM((1, N_PAD), jnp.float32)],       # carried state
        compiler_params=pltpu.CompilerParams(
            dimension_semantics=("arbitrary",)),                    # sequential time axis
    )(scal, lm_rows, params, w_pad, state0_row)

    return act_out[:, 0, epg], state_out[0, :n]


def ring_attractor_forward(input_values, state, params, w_pad,
                           velocity_scaling, landmark_scaling):
    """Single forward step (matches torch forward signature semantics)."""
    epg_act, new_state = ring_attractor_simulate(
        jnp.asarray(input_values, jnp.float32)[None, :], state, params, w_pad,
        velocity_scaling, landmark_scaling)
    return epg_act[0], new_state


# ---------------------------------------------------------------------------
# Pure-JAX reference (single step, torch semantics) for verification
# ---------------------------------------------------------------------------
def reference_step(input_values, state, w_eff, gain, bias, tau,
                   velocity_scaling, landmark_scaling):
    dt = input_values[0]
    v = input_values[1]
    lm = input_values[2:]
    act = jnp.maximum(gain * state + bias, 0.0)
    weighted = act @ w_eff
    lm_in = jnp.zeros((NUM_NEURONS,), jnp.float32).at[POP_SLICES["epg"]].set(
        lm * landmark_scaling)
    pen = POP_SLICES["pen"]
    pos = jnp.zeros((NUM_NEURONS,), jnp.float32).at[pen.start:pen.start + HEMI].set(1.0)
    neg = jnp.zeros((NUM_NEURONS,), jnp.float32).at[pen.start + HEMI:pen.stop].set(1.0)
    vel_in = jnp.abs(v) * jnp.exp(velocity_scaling) * jnp.where(v > 0, pos, neg)
    new_state = state + (-state + vel_in + lm_in + weighted) / tau * dt
    out = jnp.maximum(gain * new_state + bias, 0.0)
    return out[POP_SLICES["epg"]], new_state


if __name__ == "__main__":
    # Deterministic synthetic "connectome" weights and parameters.
    rng = np.random.RandomState(0)
    initial_weights = (rng.randn(NUM_NEURONS, NUM_NEURONS) * 0.05).astype(np.float32)
    w_eff = build_effective_weights(initial_weights, POP_SLICES, weight_scale=1.0)
    gain_m, bias_m, tau_m = build_neuron_property_masks(
        POP_SLICES, NUM_NEURONS, gain_val=1.5, bias_val=0.1, tau_val=0.02)
    velocity_scaling = jnp.float32(0.2)   # nn.Parameter scalar
    landmark_scaling = jnp.float32(0.3)   # nn.Parameter scalar

    params, w_pad = pack_static_params(w_eff, gain_m, bias_m, tau_m)

    # Example trajectory: T steps of [dt, velocity, landmarks...]
    T = 8
    key = jax.random.PRNGKey(0)
    k_state, k_lm, k_v = jax.random.split(key, 3)
    state0 = jax.random.normal(k_state, (NUM_NEURONS,), dtype=jnp.float32)
    landmarks = jax.random.normal(k_lm, (T, N_EPG), dtype=jnp.float32)
    velocities = jax.random.normal(k_v, (T,), dtype=jnp.float32)
    dts = jnp.full((T,), 0.01, jnp.float32)
    step_inputs = jnp.concatenate([dts[:, None], velocities[:, None], landmarks], axis=1)

    # Multi-step kernel run.
    epg_acts, final_state = ring_attractor_simulate(
        step_inputs, state0, params, w_pad, velocity_scaling, landmark_scaling)
    jax.block_until_ready((epg_acts, final_state))

    # Reference: apply the single-step torch-semantics forward T times.
    gain_j, bias_j, tau_j = map(jnp.asarray, (gain_m, bias_m, tau_m))
    w_j = jnp.asarray(w_eff)
    ref_state = state0
    ref_acts = []
    for t in range(T):
        a, ref_state = reference_step(step_inputs[t], ref_state, w_j,
                                      gain_j, bias_j, tau_j,
                                      velocity_scaling, landmark_scaling)
        ref_acts.append(a)
    ref_acts = jnp.stack(ref_acts)

    np.testing.assert_allclose(np.asarray(epg_acts), np.asarray(ref_acts),
                               rtol=1e-4, atol=1e-4)
    np.testing.assert_allclose(np.asarray(final_state), np.asarray(ref_state),
                               rtol=1e-4, atol=1e-4)

    # Single-step forward (T=1 grid) also matches.
    one_act, one_state = ring_attractor_forward(
        step_inputs[0], state0, params, w_pad, velocity_scaling, landmark_scaling)
    jax.block_until_ready((one_act, one_state))
    ref_a0, ref_s0 = reference_step(step_inputs[0], state0, w_j, gain_j, bias_j, tau_j,
                                    velocity_scaling, landmark_scaling)
    np.testing.assert_allclose(np.asarray(one_act), np.asarray(ref_a0),
                               rtol=1e-4, atol=1e-4)
    np.testing.assert_allclose(np.asarray(one_state), np.asarray(ref_s0),
                               rtol=1e-4, atol=1e-4)

    # TODO(synk): noise_function hook (None by default in the torch module) is not implemented.
    print("KERNEL_OK")
</pallas_src>

<mosaic_0001>
module attributes {stable_mosaic.version = 11 : i64} {
  func.func @ring_attractor_kernel(%arg0: i32, %arg1: memref<4x8xf32, #tpu.memory_space<smem>>, %arg2: memref<1x1x128xf32, #tpu.memory_space<vmem>>, %arg3: memref<8x128xf32, #tpu.memory_space<vmem>>, %arg4: memref<128x128xf32, #tpu.memory_space<vmem>>, %arg5: memref<1x128xf32, #tpu.memory_space<vmem>>, %arg6: memref<1x1x128xf32, #tpu.memory_space<vmem>>, %arg7: memref<1x128xf32, #tpu.memory_space<vmem>>, %arg8: memref<1x128xf32, #tpu.memory_space<vmem>>) attributes {dimension_semantics = [#tpu.dimension_semantics<arbitrary>], iteration_bounds = array<i64: 8>, scalar_prefetch = 0 : i64, scratch_operands = 1 : i64, tpu.core_type = #tpu.core_type<tc>, window_params = [{transform_indices = @transform_0, window_bounds = array<i64: 4, 8>}, {transform_indices = @transform_1, window_bounds = array<i64: 1, 1, 128>}, {pipeline_mode = #tpu.pipeline_mode<synchronous>, transform_indices = @transform_2, window_bounds = array<i64: 8, 128>}, {pipeline_mode = #tpu.pipeline_mode<synchronous>, transform_indices = @transform_3, window_bounds = array<i64: 128, 128>}, {pipeline_mode = #tpu.pipeline_mode<synchronous>, transform_indices = @transform_4, window_bounds = array<i64: 1, 128>}, {transform_indices = @transform_5, window_bounds = array<i64: 1, 1, 128>}, {pipeline_mode = #tpu.pipeline_mode<synchronous>, transform_indices = @transform_6, window_bounds = array<i64: 1, 128>}]} {
    %c0_i32 = arith.constant 0 : i32
    %0 = arith.cmpi eq, %arg0, %c0_i32 : i32
    %1 = arith.extui %0 : i1 to i32
    %c0_i32_0 = arith.constant 0 : i32
    %2 = arith.cmpi ne, %1, %c0_i32_0 : i32
    scf.if %2 {
      %c0_27 = arith.constant 0 : index
      %c0_28 = arith.constant 0 : index
      %50 = vector.load %arg5[%c0_27, %c0_28] : memref<1x128xf32, #tpu.memory_space<vmem>>, vector<1x128xf32>
      %c0_29 = arith.constant 0 : index
      %c0_30 = arith.constant 0 : index
      %51 = vector.load %arg8[%c0_29, %c0_30] : memref<1x128xf32, #tpu.memory_space<vmem>>, vector<1x128xf32>
      tpu.vector_store %arg8[%c0_29, %c0_30], %50 {strides = array<i32>} : memref<1x128xf32, #tpu.memory_space<vmem>>, vector<1x128xf32>,
    } else {
    }
    %c0 = arith.constant 0 : index
    %3 = arith.index_cast %arg0 : i32 to index
    %4 = memref.load %arg1[%c0, %3] : memref<4x8xf32, #tpu.memory_space<smem>>
    %c1 = arith.constant 1 : index
    %5 = arith.index_cast %arg0 : i32 to index
    %6 = memref.load %arg1[%c1, %5] : memref<4x8xf32, #tpu.memory_space<smem>>
    %c2 = arith.constant 2 : index
    %7 = arith.index_cast %arg0 : i32 to index
    %8 = memref.load %arg1[%c2, %7] : memref<4x8xf32, #tpu.memory_space<smem>>
    %c3 = arith.constant 3 : index
    %9 = arith.index_cast %arg0 : i32 to index
    %10 = memref.load %arg1[%c3, %9] : memref<4x8xf32, #tpu.memory_space<smem>>
    %c0_1 = arith.constant 0 : index
    %c0_2 = arith.constant 0 : index
    %11 = vector.load %arg3[%c0_1, %c0_2] : memref<8x128xf32, #tpu.memory_space<vmem>>, vector<1x128xf32>
    %c1_3 = arith.constant 1 : index
    %c0_4 = arith.constant 0 : index
    %12 = vector.load %arg3[%c1_3, %c0_4] : memref<8x128xf32, #tpu.memory_space<vmem>>, vector<1x128xf32>
    %c2_5 = arith.constant 2 : index
    %c0_6 = arith.constant 0 : index
    %13 = vector.load %arg3[%c2_5, %c0_6] : memref<8x128xf32, #tpu.memory_space<vmem>>, vector<1x128xf32>
    %c3_7 = arith.constant 3 : index
    %c0_8 = arith.constant 0 : index
    %14 = vector.load %arg3[%c3_7, %c0_8] : memref<8x128xf32, #tpu.memory_space<vmem>>, vector<1x128xf32>
    %c4 = arith.constant 4 : index
    %c0_9 = arith.constant 0 : index
    %15 = vector.load %arg3[%c4, %c0_9] : memref<8x128xf32, #tpu.memory_space<vmem>>, vector<1x128xf32>
    %c0_10 = arith.constant 0 : index
    %c0_11 = arith.constant 0 : index
    %16 = vector.load %arg8[%c0_10, %c0_11] : memref<1x128xf32, #tpu.memory_space<vmem>>, vector<1x128xf32>
    %17 = arith.mulf %11, %16 : vector<1x128xf32>
    %18 = arith.addf %17, %12 : vector<1x128xf32>
    %cst = arith.constant 0.000000e+00 : f32
    %19 = vector.broadcast %cst : f32 to vector<1x128xf32>
    %20 = arith.maximumf %18, %19 : vector<1x128xf32>
    %c0_12 = arith.constant 0 : index
    %c0_13 = arith.constant 0 : index
    %21 = vector.load %arg4[%c0_12, %c0_13] : memref<128x128xf32, #tpu.memory_space<vmem>>, vector<128x128xf32>
    %cst_14 = arith.constant dense<0.000000e+00> : vector<1x128xf32>
    %22 = tpu.matmul %20, %21, %cst_14 {dimension_numbers = #tpu.dot_dimension_numbers<[1], [0], [0], [1], [0, 0, 1, 1], [], []>} : vector<1x128xf32>, vector<128x128xf32>, vector<1x128xf32> -> vector<1x128xf32>
    %c0_15 = arith.constant 0 : index
    %c0_16 = arith.constant 0 : index
    %c0_17 = arith.constant 0 : index
    %23 = vector.load %arg2[%c0_15, %c0_16, %c0_17] : memref<1x1x128xf32, #tpu.memory_space<vmem>>, vector<1x1x128xf32>
    %24 = vector.shape_cast %23 : vector<1x1x128xf32> to vector<1x128xf32>
    %25 = vector.broadcast %10 : f32 to vector<1x128xf32>
    %26 = arith.mulf %24, %25 : vector<1x128xf32>
    %cst_18 = arith.constant 0.000000e+00 : f32
    %27 = arith.cmpf ogt, %6, %cst_18 : f32
    %28 = arith.select %27, %14, %15 : vector<1x128xf32>
    %29 = vector.broadcast %8 : f32 to vector<1x128xf32>
    %30 = arith.mulf %29, %28 : vector<1x128xf32>
    %cst_19 = arith.constant 0.000000e+00 : f32
    %31 = vector.broadcast %cst_19 : f32 to vector<1x128xf32>
    %32 = arith.subf %31, %16 : vector<1x128xf32>
    %33 = arith.addf %32, %30 : vector<1x128xf32>
    %34 = arith.addf %33, %26 : vector<1x128xf32>
    %35 = arith.addf %34, %22 : vector<1x128xf32>
    %36 = vector.broadcast %4 : f32 to vector<1x128xf32>
    %37 = arith.mulf %13, %36 : vector<1x128xf32>
    %38 = arith.mulf %35, %37 : vector<1x128xf32>
    %39 = arith.addf %16, %38 : vector<1x128xf32>
    %c0_20 = arith.constant 0 : index
    %c0_21 = arith.constant 0 : index
    %40 = vector.load %arg8[%c0_20, %c0_21] : memref<1x128xf32, #tpu.memory_space<vmem>>, vector<1x128xf32>
    tpu.vector_store %arg8[%c0_20, %c0_21], %39 {strides = array<i32>} : memref<1x128xf32, #tpu.memory_space<vmem>>, vector<1x128xf32>,
    %41 = arith.mulf %11, %39 : vector<1x128xf32>
    %42 = arith.addf %41, %12 : vector<1x128xf32>
    %cst_22 = arith.constant 0.000000e+00 : f32
    %43 = vector.broadcast %cst_22 : f32 to vector<1x128xf32>
    %44 = arith.maximumf %42, %43 : vector<1x128xf32>
    %45 = vector.shape_cast %44 : vector<1x128xf32> to vector<1x1x128xf32>
    %c0_23 = arith.constant 0 : index
    %c0_24 = arith.constant 0 : index
    %c0_25 = arith.constant 0 : index
    %46 = vector.load %arg6[%c0_23, %c0_24, %c0_25] : memref<1x1x128xf32, #tpu.memory_space<vmem>>, vector<1x1x128xf32>
    tpu.vector_store %arg6[%c0_23, %c0_24, %c0_25], %45 {strides = array<i32>} : memref<1x1x128xf32, #tpu.memory_space<vmem>>, vector<1x1x128xf32>,
    %c7_i32 = arith.constant 7 : i32
    %47 = arith.cmpi eq, %arg0, %c7_i32 : i32
    %48 = arith.extui %47 : i1 to i32
    %c0_i32_26 = arith.constant 0 : i32
    %49 = arith.cmpi ne, %48, %c0_i32_26 : i32
    scf.if %49 {
      %c0_27 = arith.constant 0 : index
      %c0_28 = arith.constant 0 : index
      %50 = vector.load %arg7[%c0_27, %c0_28] : memref<1x128xf32, #tpu.memory_space<vmem>>, vector<1x128xf32>
      tpu.vector_store %arg7[%c0_27, %c0_28], %39 {strides = array<i32>} : memref<1x128xf32, #tpu.memory_space<vmem>>, vector<1x128xf32>,
    } else {
    }
    return
  }
  func.func @transform_0(%arg0: i32) -> (i32, i32) {
    %c0_i32 = arith.constant 0 : i32
    %c0_i32_0 = arith.constant 0 : i32
    %c0_i32_1 = arith.constant 0 : i32
    return %c0_i32, %c0_i32_0 : i32, i32
  }
  func.func @transform_1(%arg0: i32) -> (i32, i32, i32) {
    %c0_i32 = arith.constant 0 : i32
    %c0_i32_0 = arith.constant 0 : i32
    %c0_i32_1 = arith.constant 0 : i32
    return %arg0, %c0_i32, %c0_i32_0 : i32, i32, i32
  }
  func.func @transform_2(%arg0: i32) -> (i32, i32) {
    %c0_i32 = arith.constant 0 : i32
    %c0_i32_0 = arith.constant 0 : i32
    %c0_i32_1 = arith.constant 0 : i32
    return %c0_i32, %c0_i32_0 : i32, i32
  }
  func.func @transform_3(%arg0: i32) -> (i32, i32) {
    %c0_i32 = arith.constant 0 : i32
    %c0_i32_0 = arith.constant 0 : i32
    %c0_i32_1 = arith.constant 0 : i32
    return %c0_i32, %c0_i32_0 : i32, i32
  }
  func.func @transform_4(%arg0: i32) -> (i32, i32) {
    %c0_i32 = arith.constant 0 : i32
    %c0_i32_0 = arith.constant 0 : i32
    %c0_i32_1 = arith.constant 0 : i32
    return %c0_i32, %c0_i32_0 : i32, i32
  }
  func.func @transform_5(%arg0: i32) -> (i32, i32, i32) {
    %c0_i32 = arith.constant 0 : i32
    %c0_i32_0 = arith.constant 0 : i32
    %c0_i32_1 = arith.constant 0 : i32
    return %arg0, %c0_i32, %c0_i32_0 : i32, i32, i32
  }
  func.func @transform_6(%arg0: i32) -> (i32, i32) {
    %c0_i32 = arith.constant 0 : i32
    %c0_i32_0 = arith.constant 0 : i32
    %c0_i32_1 = arith.constant 0 : i32
    return %c0_i32, %c0_i32_0 : i32, i32
  }
}

</mosaic_0001>

<llo_original>
// kernel: tpu_custom_call.1
$region0: #{tpu_custom_call.1}
  #allocation0 [shape = 'u32[]', space=smem, size = 0x4, offset = 0x4, fixed_abs, tag = 'smem constant byte address 0x4 - core index']
  #allocation1 [shape = 'u32[144,128]{1,0:T(1,128)}', space=vmem, size = 0x12000, scoped, tag = 'internal scratch']
  #allocation2 [shape = 'f32[1,128]{1,0:T(1,128)}', space=vmem, size = 0x200, scoped, tag = 'scratch operand']
  %s0 = inlined_call_operand.hbm [shape: f32[4,8], index: 0, kind: input, shape index: {}]
  %s1 = inlined_call_operand.hbm [shape: f32[8,1,128], index: 1, kind: input, shape index: {}]
  %s2 = inlined_call_operand.hbm [shape: f32[8,128], index: 2, kind: input, shape index: {}]
  %s3 = inlined_call_operand.hbm [shape: f32[128,128], index: 3, kind: input, shape index: {}]
  %s4 = inlined_call_operand.vmem [shape: f32[1,128], index: 4, kind: input, shape index: {}]
  %s5 = inlined_call_operand.hbm [shape: f32[8,1,128], index: 5, kind: output, shape index: {0}]
  %s6 = inlined_call_operand.hbm [shape: f32[1,128], index: 6, kind: output, shape index: {1}]
  %7 = xla_tuple %s5, %s6
  %s8 = sld [smem:[#allocation0]]
  $region85: #{tpu_custom_call.1} parent=0
    _
  %s10 = ssub.s32 1, %s8
  %s11 = scalar_select 0, %s10, %s8
  $region1: #{tpu_custom_call.1} parent=0
    #allocation3 [shape = 'u8[2048]{0}', space=smem, size = 0x800, scoped, tag = 'input window, operand 0, single buffered']
    #allocation4 [shape = 's32[2]{0}', space=sflag, size = 0x8, scoped, tag = 'scoped memory for tpu_custom_call.1']
    #allocation5 [shape = 's32[2]{0}', space=sflag, size = 0x8, scoped, tag = 'scoped memory for tpu_custom_call.1']
    #allocation6 [shape = 's32[2]{0}', space=sflag, size = 0x8, scoped, tag = 'scoped memory for tpu_custom_call.1']
    #allocation7 [shape = 'u8[1024]{0}', space=vmem, size = 0x400, scoped, tag = 'input window, operand 1']
    #allocation8 [shape = 'u8[4096]{0}', space=vmem, size = 0x1000, scoped, tag = 'input window, operand 2, single buffered']
    #allocation9 [shape = 's32[1]{0}', space=sflag, size = 0x4, scoped, tag = 'scoped memory for tpu_custom_call.1']
    #allocation10 [shape = 'u8[65536]{0}', space=vmem, size = 0x10000, scoped, tag = 'input window, operand 3, single buffered']
    #allocation11 [shape = 'u8[1024]{0}', space=vmem, size = 0x400, scoped, tag = 'output window, operand 0']
    #allocation12 [shape = 'u8[512]{0}', space=vmem, size = 0x400, scoped, tag = 'output window, operand 1, single buffered']
    #allocation13 [shape = 's32[1]{0}', space=sflag, size = 0x4, scoped, tag = 'scoped memory for tpu_custom_call.1']
    %12 = vsyncpa [#allocation6], 0
    %13 = vsyncpa [#allocation4], 0
    %s14 = scalar_lea.sflag [#allocation4], 1
    %15 = vsyncpa %s14, 0
    %16 = vsyncpa [#allocation9], 0
    %17 = vsyncpa [#allocation5], 0
    %s18 = scalar_lea.sflag [#allocation5], 1
    %19 = vsyncpa %s18, 0
    %20 = vsyncpa [#allocation13], 0
    loop: start=0, step=1, limit=10
    $region2: #{tpu_custom_call.1} parent=1 // loop_pre_header
      _
    $region3: #{tpu_custom_call.1} parent=1 // loop_header
      %s22 = sphi 0, %s26
      %p23 = scmp.ge.s32.totalorder %s22, 10
      %s30 = sphi 0, %s30
      %s32 = sphi 0, %s30
      %s33 = sphi 0, %s32
      %s47 = sphi 0, %s33
      %s53 = sphi 0, %s55
      %s56 = sphi 0, %s53
      %s57 = sphi 0, %s56
      %s73 = sphi 0, %s57
      %s77 = sphi 0, %s77
      %s79 = sphi 0, %s77
      %s80 = sphi 0, %s79
      %s94 = sphi 0, %s80
      %s98 = sphi 0, %s98
      %s100 = sphi 0, %s98
      %s101 = sphi 0, %s100
      %s115 = sphi 0, %s101
      %s119 = sphi 0, %s119
      %s121 = sphi 0, %s119
      %s122 = sphi 0, %s121
      %s136 = sphi 0, %s122
      %s142 = sphi 0, %s144
      %s145 = sphi 0, %s142
      %s146 = sphi 0, %s145
      %s162 = sphi 0, %s146
      %s166 = sphi 0, %s166
      %s168 = sphi 0, %s166
      %s169 = sphi 0, %s168
      %s183 = sphi 0, %s169
    $region4: #{tpu_custom_call.1} parent=1 // loop_header_branch
      %25 = sbr.rel (%p23) target = $region8
    $region5: #{tpu_custom_call.1} parent=1 // loop_body
      %s27 = ssub.s32 %s22, 1
      %s28 = ssub.s32 %s22, 2
      %s29 = sadd.s32 %s22, 1
      %s31 = sadd.s32 %s30, 1
      %p34 = scmp.eq.s32.totalorder %s22, 7
      %p35 = scmp.ne.s32.totalorder %s30, %s32
      %p36 = scmp.eq.s32.totalorder %s22, 0
      %p37 = por %p35, %p36
      %p38 = scmp.ne.s32.totalorder %s30, %s32
      %p39 = scmp.eq.s32.totalorder %s27, 7
      %p40 = por %p38, %p39
      %p41 = scmp.ne.s32.totalorder %s32, %s33
      %p42 = scmp.eq.s32.totalorder %s27, 0
      %p43 = por %p41, %p42
      %p44 = scmp.ne.s32.totalorder %s32, %s33
      %p45 = scmp.eq.s32.totalorder %s28, 7
      %p46 = por %p44, %p45
      %p48 = scmp.ne.s32.totalorder %s33, %s47
      %p49 = scmp.eq.s32.totalorder %s28, 0
      %p50 = por %p48, %p49
      %s51 = ssub.s32 %s22, %s29
      %p52 = scmp.eq.s32.totalorder %s51, 0
      %s54 = sadd.s32 %s53, 1
      %s55 = scalar_select %p52, %s53, %s54
      %p58 = pneg %p52
      %p59 = scmp.eq.s32.totalorder %s22, 7
      %p60 = por %p58, %p59
      %p61 = scmp.ne.s32.totalorder %s53, %s56
      %p62 = scmp.eq.s32.totalorder %s22, 0
      %p63 = por %p61, %p62
      %p64 = scmp.ne.s32.totalorder %s53, %s56
      %p65 = scmp.eq.s32.totalorder %s27, 7
      %p66 = por %p64, %p65
      %p67 = scmp.ne.s32.totalorder %s56, %s57
      %p68 = scmp.eq.s32.totalorder %s27, 0
      %p69 = por %p67, %p68
      %p70 = scmp.ne.s32.totalorder %s56, %s57
      %p71 = scmp.eq.s32.totalorder %s28, 7
      %p72 = por %p70, %p71
      %p74 = scmp.ne.s32.totalorder %s57, %s73
      %p75 = scmp.eq.s32.totalorder %s28, 0
      %p76 = por %p74, %p75
      %s78 = sadd.s32 %s77, 1
      %p81 = scmp.eq.s32.totalorder %s22, 7
      %p82 = scmp.ne.s32.totalorder %s77, %s79
      %p83 = scmp.eq.s32.totalorder %s22, 0
      %p84 = por %p82, %p83
      %p85 = scmp.ne.s32.totalorder %s77, %s79
      %p86 = scmp.eq.s32.totalorder %s27, 7
      %p87 = por %p85, %p86
      %p88 = scmp.ne.s32.totalorder %s79, %s80
      %p89 = scmp.eq.s32.totalorder %s27, 0
      %p90 = por %p88, %p89
      %p91 = scmp.ne.s32.totalorder %s79, %s80
      %p92 = scmp.eq.s32.totalorder %s28, 7
      %p93 = por %p91, %p92
      %p95 = scmp.ne.s32.totalorder %s80, %s94
      %p96 = scmp.eq.s32.totalorder %s28, 0
      %p97 = por %p95, %p96
      %s99 = sadd.s32 %s98, 1
      %p102 = scmp.eq.s32.totalorder %s22, 7
      %p103 = scmp.ne.s32.totalorder %s98, %s100
      %p104 = scmp.eq.s32.totalorder %s22, 0
      %p105 = por %p103, %p104
      %p106 = scmp.ne.s32.totalorder %s98, %s100
      %p107 = scmp.eq.s32.totalorder %s27, 7
      %p108 = por %p106, %p107
      %p109 = scmp.ne.s32.totalorder %s100, %s101
      %p110 = scmp.eq.s32.totalorder %s27, 0
      %p111 = por %p109, %p110
      %p112 = scmp.ne.s32.totalorder %s100, %s101
      %p113 = scmp.eq.s32.totalorder %s28, 7
      %p114 = por %p112, %p113
      %p116 = scmp.ne.s32.totalorder %s101, %s115
      %p117 = scmp.eq.s32.totalorder %s28, 0
      %p118 = por %p116, %p117
      %s120 = sadd.s32 %s119, 1
      %p123 = scmp.eq.s32.totalorder %s22, 7
      %p124 = scmp.ne.s32.totalorder %s119, %s121
      %p125 = scmp.eq.s32.totalorder %s22, 0
      %p126 = por %p124, %p125
      %p127 = scmp.ne.s32.totalorder %s119, %s121
      %p128 = scmp.eq.s32.totalorder %s27, 7
      %p129 = por %p127, %p128
      %p130 = scmp.ne.s32.totalorder %s121, %s122
      %p131 = scmp.eq.s32.totalorder %s27, 0
      %p132 = por %p130, %p131
      %p133 = scmp.ne.s32.totalorder %s121, %s122
      %p134 = scmp.eq.s32.totalorder %s28, 7
      %p135 = por %p133, %p134
      %p137 = scmp.ne.s32.totalorder %s122, %s136
      %p138 = scmp.eq.s32.totalorder %s28, 0
      %p139 = por %p137, %p138
      %s140 = ssub.s32 %s22, %s29
      %p141 = scmp.eq.s32.totalorder %s140, 0
      %s143 = sadd.s32 %s142, 1
      %s144 = scalar_select %p141, %s142, %s143
      %p147 = pneg %p141
      %p148 = scmp.eq.s32.totalorder %s22, 7
      %p149 = por %p147, %p148
      %p150 = scmp.ne.s32.totalorder %s142, %s145
      %p151 = scmp.eq.s32.totalorder %s22, 0
      %p152 = por %p150, %p151
      %p153 = scmp.ne.s32.totalorder %s142, %s145
      %p154 = scmp.eq.s32.totalorder %s27, 7
      %p155 = por %p153, %p154
      %p156 = scmp.ne.s32.totalorder %s145, %s146
      %p157 = scmp.eq.s32.totalorder %s27, 0
      %p158 = por %p156, %p157
      %p159 = scmp.ne.s32.totalorder %s145, %s146
      %p160 = scmp.eq.s32.totalorder %s28, 7
      %p161 = por %p159, %p160
      %p163 = scmp.ne.s32.totalorder %s146, %s162
      %p164 = scmp.eq.s32.totalorder %s28, 0
      %p165 = por %p163, %p164
      %s167 = sadd.s32 %s166, 1
      %p170 = scmp.eq.s32.totalorder %s22, 7
      %p171 = scmp.ne.s32.totalorder %s166, %s168
      %p172 = scmp.eq.s32.totalorder %s22, 0
      %p173 = por %p171, %p172
      %p174 = scmp.ne.s32.totalorder %s166, %s168
      %p175 = scmp.eq.s32.totalorder %s27, 7
      %p176 = por %p174, %p175
      %p177 = scmp.ne.s32.totalorder %s168, %s169
      %p178 = scmp.eq.s32.totalorder %s27, 0
      %p179 = por %p177, %p178
      %p180 = scmp.ne.s32.totalorder %s168, %s169
      %p181 = scmp.eq.s32.totalorder %s28, 7
      %p182 = por %p180, %p181
      %p184 = scmp.ne.s32.totalorder %s169, %s183
      %p185 = scmp.eq.s32.totalorder %s28, 0
      %p186 = por %p184, %p185
      %p187 = scmp.le.s32.totalorder 1, %s22
      %p188 = scmp.lt.s32.totalorder %s22, 9
      %p189 = pnand %p187, %p188
      %p190 = pneg %p189
      // Predicated region
      $region9: #{tpu_custom_call.1} parent=5 // pred_check
        _
      $region10: #{tpu_custom_call.1} parent=5 // pred_check_branch
        %192 = sbr.rel (%p189) target = $region12
      $region11: #{tpu_custom_call.1} parent=5 // pred_region
        %s193 = ssub.s32 %s22, 1
        // Predicated region
        $region13: #{tpu_custom_call.1} parent=11 // pred_check
          %p194 = pneg %p43
        $region14: #{tpu_custom_call.1} parent=11 // pred_check_branch
          %196 = sbr.rel (%p194) target = $region16
        $region15: #{tpu_custom_call.1} parent=11 // pred_region
          %s198 = ssub.s32 64, 64
          %199 = vsyncadd [#allocation6], %s198
          %202 = dma.hbm_to_smem %s0, 64, [#allocation3], [#allocation6]
        $region16: #{tpu_custom_call.1} parent=11 // pred_fallthru
          _
        // Predicated region
        $region17: #{tpu_custom_call.1} parent=11 // pred_check
          %p203 = pneg %p90
        $region18: #{tpu_custom_call.1} parent=11 // pred_check_branch
          %205 = sbr.rel (%p203) target = $region20
        $region19: #{tpu_custom_call.1} parent=11 // pred_region
          %s207 = ssub.s32 128, 128
          %208 = vsyncadd [#allocation9], %s207
          %s210 = sshll.u32 [#allocation8], 4
          %s211 = int_to_ptr.vmem [resolvable:$true] %s210
          %213 = dma.hbm_to_vmem [thread:$0]  %s2, 128, %s211, [#allocation9]
        $region20: #{tpu_custom_call.1} parent=11 // pred_fallthru
          _
        // Predicated region
        $region21: #{tpu_custom_call.1} parent=11 // pred_check
          %p214 = pneg %p111
        $region22: #{tpu_custom_call.1} parent=11 // pred_check_branch
          %216 = sbr.rel (%p214) target = $region24
        $region23: #{tpu_custom_call.1} parent=11 // pred_region
          %s218 = ssub.s32 2048, 2048
          %219 = vsyncadd [#allocation9], %s218
          %s220 = sshll.u32 [#allocation10], 4
          %s221 = int_to_ptr.vmem [resolvable:$true] %s220
          %226 = dma.hbm_to_vmem [thread:$0]  %s3, 2048, %s221, [#allocation9], 128, 128, 8
        $region24: #{tpu_custom_call.1} parent=11 // pred_fallthru
          _
        // Predicated region
        $region25: #{tpu_custom_call.1} parent=11 // pred_check
          %p227 = pneg %p132
        $region26: #{tpu_custom_call.1} parent=11 // pred_check_branch
          %229 = sbr.rel (%p227) target = $region28
        $region27: #{tpu_custom_call.1} parent=11 // pred_region
          _
        $region28: #{tpu_custom_call.1} parent=11 // pred_fallthru
          _
      $region12: #{tpu_custom_call.1} parent=5 // pred_fallthru
        _
      %p230 = scmp.lt.s32.totalorder %s22, 8
      // Predicated region
      $region29: #{tpu_custom_call.1} parent=5 // pred_check
        %p231 = pneg %p230
      $region30: #{tpu_custom_call.1} parent=5 // pred_check_branch
        %233 = sbr.rel (%p231) target = $region32
      $region31: #{tpu_custom_call.1} parent=5 // pred_region
        // Predicated region
        $region33: #{tpu_custom_call.1} parent=31 // pred_check
          %p234 = pneg %p63
        $region34: #{tpu_custom_call.1} parent=31 // pred_check_branch
          %236 = sbr.rel (%p234) target = $region36
        $region35: #{tpu_custom_call.1} parent=31 // pred_region
          %s237 = sand.u32 %s53, 1
          %s238 = scalar_lea.sflag [#allocation4], %s237
          %s239 = sand.u32 %s53, 1
          %s240 = scalar_lea.vmem [#allocation7], %s239
          %s242 = ssub.s32 16, 16
          %243 = vsyncadd %s238, %s242
          %s244 = smul.addr %s22, 16
          %s245 = scalar_lea.hbm %s1, %s244
          %s247 = sshll.u32 %s240, 4
          %s248 = int_to_ptr.vmem [resolvable:$true] %s247
          %250 = dma.hbm_to_vmem [thread:$0]  %s245, 16, %s248, %s238
        $region36: #{tpu_custom_call.1} parent=31 // pred_fallthru
          _
      $region32: #{tpu_custom_call.1} parent=5 // pred_fallthru
        _
      %p251 = scmp.le.s32.totalorder 1, %s22
      %p252 = scmp.lt.s32.totalorder %s22, 9
      %p253 = pnand %p251, %p252
      %p254 = pneg %p253
      // Predicated region
      $region37: #{tpu_custom_call.1} parent=5 // pred_check
        _
      $region38: #{tpu_custom_call.1} parent=5 // pred_check_branch
        %256 = sbr.rel (%p253) target = $region40
      $region39: #{tpu_custom_call.1} parent=5 // pred_region
        %s257 = ssub.s32 %s22, 1
        // Predicated region
        $region41: #{tpu_custom_call.1} parent=39 // pred_check
          %p258 = pneg %p43
        $region42: #{tpu_custom_call.1} parent=39 // pred_check_branch
          %260 = sbr.rel (%p258) target = $region44
        $region43: #{tpu_custom_call.1} parent=39 // pred_region
          %261 = dma.done [#allocation6], 64
        $region44: #{tpu_custom_call.1} parent=39 // pred_fallthru
          _
        %s262 = sand.u32 %s56, 1
        %s263 = scalar_lea.sflag [#allocation4], %s262
        %s264 = sand.u32 %s56, 1
        %s265 = scalar_lea.vmem [#allocation7], %s264
        // Predicated region
        $region45: #{tpu_custom_call.1} parent=39 // pred_check
          %p266 = pneg %p69
        $region46: #{tpu_custom_call.1} parent=39 // pred_check_branch
          %268 = sbr.rel (%p266) target = $region48
        $region47: #{tpu_custom_call.1} parent=39 // pred_region
          %269 = dma.done %s263, 16
        $region48: #{tpu_custom_call.1} parent=39 // pred_fallthru
          _
        // Predicated region
        $region49: #{tpu_custom_call.1} parent=39 // pred_check
          %p270 = pneg %p90
        $region50: #{tpu_custom_call.1} parent=39 // pred_check_branch
          %272 = sbr.rel (%p270) target = $region52
        $region51: #{tpu_custom_call.1} parent=39 // pred_region
          %273 = dma.done [#allocation9], 128
        $region52: #{tpu_custom_call.1} parent=39 // pred_fallthru
          _
        // Predicated region
        $region53: #{tpu_custom_call.1} parent=39 // pred_check
          %p274 = pneg %p111
        $region54: #{tpu_custom_call.1} parent=39 // pred_check_branch
          %276 = sbr.rel (%p274) target = $region56
        $region55: #{tpu_custom_call.1} parent=39 // pred_region
          %277 = dma.done [#allocation9], 2048
        $region56: #{tpu_custom_call.1} parent=39 // pred_fallthru
          _
        %278 = sfence
        %p279 = pneg %p43
        %p280 = pneg %p40
        %s281 = sand.u32 %s56, 1
        %s282 = scalar_lea.sflag [#allocation4], %s281
        %s283 = sand.u32 %s56, 1
        %s284 = scalar_lea.vmem [#allocation7], %s283
        %p285 = pneg %p69
        %p286 = pneg %p66
        %p287 = pneg %p90
        %p288 = pneg %p87
        %p289 = pneg %p111
        %p290 = pneg %p108
        %p291 = pneg %p132
        %p292 = pneg %p129
        %p293 = pneg %p158
        %p294 = pneg %p155
        %s295 = sand.u32 %s145, 1
        %s296 = scalar_lea.sflag [#allocation5], %s295
        %s297 = sand.u32 %s145, 1
        %s298 = scalar_lea.vmem [#allocation11], %s297
        %p299 = pneg %p179
        %p300 = pneg %p176
        %p301 = scmp.eq.s32.totalorder %s27, 0
        // Predicated region
        $region57: #{tpu_custom_call.1} parent=39 // pred_check
          %p302 = pneg %p301
        $region58: #{tpu_custom_call.1} parent=39 // pred_check_branch
          %304 = sbr.rel (%p302) target = $region60
        $region59: #{tpu_custom_call.1} parent=39 // pred_region
          %v305 = vld [vmem:[%s4] sm:$0x1]
          %306 = vst [vmem:[#allocation2] sm:$0x1] %v305
        $region60: #{tpu_custom_call.1} parent=39 // pred_fallthru
          _
        %s307 = sld [smem:[#allocation3 + %s27]]
        %s308 = sshra.s32 %s27, 7
        %s309 = sand.u32 %s27, 127
        %s310 = sadd.s32 %s308, 1
        %s311 = smul.u32 %s310, 128
        %s312 = sshra.s32 %s27, 7
        %s313 = sand.u32 %s27, 127
        %s314 = sadd.s32 %s311, %s313
        %s315 = sld [smem:[#allocation3 + %s314]]
        %s316 = sadd.s32 %s308, 2
        %s317 = smul.u32 %s316, 128
        %s318 = sadd.s32 %s317, %s313
        %s319 = sld [smem:[#allocation3 + %s318]]
        %s320 = sadd.s32 %s308, 3
        %s321 = smul.u32 %s320, 128
        %s322 = sadd.s32 %s321, %s313
        %s323 = sld [smem:[#allocation3 + %s322]]
        %v324 = vld [vmem:[#allocation8] sm:$0x1]
        %v325 = vld [vmem:[#allocation8 + $0x1] sm:$0x1]
        %v326 = vld [vmem:[#allocation8 + $0x2] sm:$0x1]
        %v327 = vld [vmem:[#allocation8 + $0x3] sm:$0x1]
        %v328 = vld [vmem:[#allocation8 + $0x4] sm:$0x1]
        %v329 = vld [vmem:[#allocation2] sm:$0x1]
        %v330 = vmul.f32 %v324, %v329
        %v331 = vadd.f32 %v330, %v325
        %v332 = vmax.f32 %v331, 0.0
        %v333 = vld [vmem:[#allocation10] sm:$0xff]
        %v334 = vld [vmem:[#allocation10 + $0x8] sm:$0xff]
        %v335 = vld [vmem:[#allocation10 + $0x10] sm:$0xff]
        %v336 = vld [vmem:[#allocation10 + $0x18] sm:$0xff]
        %v337 = vld [vmem:[#allocation10 + $0x20] sm:$0xff]
        %v338 = vld [vmem:[#allocation10 + $0x28] sm:$0xff]
        %v339 = vld [vmem:[#allocation10 + $0x30] sm:$0xff]
        %v340 = vld [vmem:[#allocation10 + $0x38] sm:$0xff]
        %v341 = vld [vmem:[#allocation10 + $0x40] sm:$0xff]
        %v342 = vld [vmem:[#allocation10 + $0x48] sm:$0xff]
        %v343 = vld [vmem:[#allocation10 + $0x50] sm:$0xff]
        %v344 = vld [vmem:[#allocation10 + $0x58] sm:$0xff]
        %v345 = vld [vmem:[#allocation10 + $0x60] sm:$0xff]
        %v346 = vld [vmem:[#allocation10 + $0x68] sm:$0xff]
        %v347 = vld [vmem:[#allocation10 + $0x70] sm:$0xff]
        %v348 = vld [vmem:[#allocation10 + $0x78] sm:$0xff]
        %349 = vmatprep.subr.mxu0 0.0
        %350 = vmatpush1.msra.mxu0 %v333
        %351 = vmatprep.subr.mxu0 0.0
        %352 = vmatpush1.msra.mxu0 %v334
        %353 = vmatprep.subr.mxu0 0.0
        %354 = vmatpush1.msra.mxu0 %v335
        %355 = vmatprep.subr.mxu0 0.0
        %356 = vmatpush1.msra.mxu0 %v336
        %357 = vmatprep.subr.mxu0 0.0
        %358 = vmatpush1.msra.mxu0 %v337
        %359 = vmatprep.subr.mxu0 0.0
        %360 = vmatpush1.msra.mxu0 %v338
        %361 = vmatprep.subr.mxu0 0.0
        %362 = vmatpush1.msra.mxu0 %v339
        %363 = vmatprep.subr.mxu0 0.0
        %364 = vmatpush1.msra.mxu0 %v340
        %365 = vmatprep.subr.mxu0 0.0
        %366 = vmatpush1.msra.mxu0 %v341
        %367 = vmatprep.subr.mxu0 0.0
        %368 = vmatpush1.msra.mxu0 %v342
        %369 = vmatprep.subr.mxu0 0.0
        %370 = vmatpush1.msra.mxu0 %v343
        %371 = vmatprep.subr.mxu0 0.0
        %372 = vmatpush1.msra.mxu0 %v344
        %373 = vmatprep.subr.mxu0 0.0
        %374 = vmatpush1.msra.mxu0 %v345
        %375 = vmatprep.subr.mxu0 0.0
        %376 = vmatpush1.msra.mxu0 %v346
        %377 = vmatprep.subr.mxu0 0.0
        %378 = vmatpush1.msra.mxu0 %v347
        %379 = vmatprep.subr.mxu0 0.0
        %380 = vmatpush1.msra.mxu0 %v348
        %381 = vmatprep.subr.mxu0 0.0
        %382 = vmatpush1.msra.mxu0 0.0
        %383 = vmatprep.subr.mxu0 0.0
        %384 = vmatpush1.msra.mxu0 0.0
        %385 = vmatprep.subr.mxu0 0.0
        %386 = vmatpush1.msra.mxu0 0.0
        %387 = vmatprep.subr.mxu0 0.0
        %388 = vmatpush1.msra.mxu0 0.0
        %389 = vmatprep.subr.mxu0 0.0
        %390 = vmatpush1.msra.mxu0 0.0
        %391 = vmatprep.subr.mxu0 0.0
        %392 = vmatpush1.msra.mxu0 0.0
        %393 = vmatprep.subr.mxu0 0.0
        %394 = vmatpush1.msra.mxu0 0.0
        %395 = vmatprep.subr.mxu0 0.0
        %396 = vmatpush1.msra.mxu0 0.0
        %397 = vmatprep.subr.mxu0 0.0
        %398 = vmatpush1.msra.mxu0 0.0
        %399 = vmatprep.subr.mxu0 0.0
        %400 = vmatpush1.msra.mxu0 0.0
        %401 = vmatprep.subr.mxu0 0.0
        %402 = vmatpush1.msra.mxu0 0.0
        %403 = vmatprep.subr.mxu0 0.0
        %404 = vmatpush1.msra.mxu0 0.0
        %405 = vmatprep.subr.mxu0 0.0
        %406 = vmatpush1.msra.mxu0 0.0
        %407 = vmatprep.subr.mxu0 0.0
        %408 = vmatpush1.msra.mxu0 0.0
        %409 = vmatprep.subr.mxu0 0.0
        %410 = vmatpush1.msra.mxu0 0.0
        %411 = vmatprep.subr.mxu0 0.0
        %412 = vmatpush1.msra.mxu0 0.0
        %413 = vmatprep.mubr.f32.mxu0 0.0
        %414 = vmatmul.mubr.f32.gmra.mrb[0].mxu0 %v332
        %v415 = vpop.f32.mrb[0].mxu0
        %v416 = vadd.f32 0.0, %v415
        %v417 = vpop.f32.mrb[0].mxu0
        %418 = vdwg.mxu0
        %v419 = vld [vmem:[%s265] sm:$0x1]
        %v420 = vstv %s323
        %v421 = vmul.f32 %v419, %v420
        %p422 = scmp.gt.f32.partialorder %s315, 0.0
        %s423 = scalar_select %p422, 1, 0
        %v424 = vstv %s423
        %vm425 = vcmp.eq.s32.totalorder %v424, 1
        %v426 = vsel %vm425, %v327, %v328
        %v427 = vstv %s319
        %v428 = vmul.f32 %v427, %v426
        %v429 = vsub.f32 0.0, %v329
        %v430 = vadd.f32 %v429, %v428
        %v431 = vadd.f32 %v430, %v421
        %v432 = vadd.f32 %v431, %v416
        %v433 = vstv %s307
        %v434 = vmul.f32 %v326, %v433
        %v435 = vmul.f32 %v432, %v434
        %v436 = vadd.f32 %v329, %v435
        %437 = vst [vmem:[#allocation2] sm:$0x1] %v436
        %v438 = vmul.f32 %v324, %v436
        %v439 = vadd.f32 %v438, %v325
        %v440 = vmax.f32 %v439, 0.0
        %441 = vst [vmem:[%s298] sm:$0x1] %v440
        %p442 = scmp.eq.s32.totalorder %s27, 7
        // Predicated region
        $region61: #{tpu_custom_call.1} parent=39 // pred_check
          %p443 = pneg %p442
        $region62: #{tpu_custom_call.1} parent=39 // pred_check_branch
          %445 = sbr.rel (%p443) target = $region64
        $region63: #{tpu_custom_call.1} parent=39 // pred_region
          %446 = vst [vmem:[#allocation12] sm:$0x1] %v436
        $region64: #{tpu_custom_call.1} parent=39 // pred_fallthru
          _
        %s447 = sand.u32 %s145, 1
        %s448 = scalar_lea.sflag [#allocation5], %s447
        %s449 = sand.u32 %s145, 1
        %s450 = scalar_lea.vmem [#allocation11], %s449
        // Predicated region
        $region65: #{tpu_custom_call.1} parent=39 // pred_check
          %p451 = pneg %p155
        $region66: #{tpu_custom_call.1} parent=39 // pred_check_branch
          %453 = sbr.rel (%p451) target = $region68
        $region67: #{tpu_custom_call.1} parent=39 // pred_region
          %s455 = ssub.s32 16, 16
          %456 = vsyncadd %s448, %s455
          %s457 = smul.addr %s27, 16
          %s458 = scalar_lea.hbm %s5, %s457
          %s460 = sshll.u32 %s450, 4
          %s461 = int_to_ptr.vmem [resolvable:$true] %s460
          %463 = dma.vmem_to_hbm [thread:$0]  %s461, 16, %s458, %s448
        $region68: #{tpu_custom_call.1} parent=39 // pred_fallthru
          _
        // Predicated region
        $region69: #{tpu_custom_call.1} parent=39 // pred_check
          %p464 = pneg %p176
        $region70: #{tpu_custom_call.1} parent=39 // pred_check_branch
          %466 = sbr.rel (%p464) target = $region72
        $region71: #{tpu_custom_call.1} parent=39 // pred_region
          %s468 = ssub.s32 16, 16
          %469 = vsyncadd [#allocation13], %s468
          %s471 = sshll.u32 [#allocation12], 4
          %s472 = int_to_ptr.vmem [resolvable:$true] %s471
          %474 = dma.vmem_to_hbm [thread:$0]  %s472, 16, %s6, [#allocation13]
        $region72: #{tpu_custom_call.1} parent=39 // pred_fallthru
          _
        // Predicated region
        $region73: #{tpu_custom_call.1} parent=39 // pred_check
          %p475 = pneg %p176
        $region74: #{tpu_custom_call.1} parent=39 // pred_check_branch
          %477 = sbr.rel (%p475) target = $region76
        $region75: #{tpu_custom_call.1} parent=39 // pred_region
          %478 = dma.done [#allocation13], 16
        $region76: #{tpu_custom_call.1} parent=39 // pred_fallthru
          _
      $region40: #{tpu_custom_call.1} parent=5 // pred_fallthru
        _
      %p479 = scmp.le.s32.totalorder 2, %s22
      // Predicated region
      $region77: #{tpu_custom_call.1} parent=5 // pred_check
        %p480 = pneg %p479
      $region78: #{tpu_custom_call.1} parent=5 // pred_check_branch
        %482 = sbr.rel (%p480) target = $region80
      $region79: #{tpu_custom_call.1} parent=5 // pred_region
        %s483 = ssub.s32 %s22, 2
        // Predicated region
        $region81: #{tpu_custom_call.1} parent=79 // pred_check
          %p484 = pneg %p161
        $region82: #{tpu_custom_call.1} parent=79 // pred_check_branch
          %486 = sbr.rel (%p484) target = $region84
        $region83: #{tpu_custom_call.1} parent=79 // pred_region
          %s487 = sand.u32 %s146, 1
          %s488 = scalar_lea.sflag [#allocation5], %s487
          %s489 = sand.u32 %s146, 1
          %s490 = scalar_lea.vmem [#allocation11], %s489
          %491 = dma.done %s488, 16
        $region84: #{tpu_custom_call.1} parent=79 // pred_fallthru
          _
      $region80: #{tpu_custom_call.1} parent=5 // pred_fallthru
        _
    $region6: #{tpu_custom_call.1} parent=1 // loop_footer
      %s26 = sadd.s32 1, %s22
    $region7: #{tpu_custom_call.1} parent=1 // loop_footer_branch
      %21 = sbr.rel target = $region3
    $region8: #{tpu_custom_call.1} parent=1 // loop_exit
      _
    %492 = vsyncpa [#allocation4], 1
    %s493 = scalar_lea.sflag [#allocation4], 1
    %494 = vsyncpa %s493, 1
    %495 = vsyncpa [#allocation9], 1
    %496 = vsyncpa [#allocation5], 1
    %s497 = scalar_lea.sflag [#allocation5], 1
    %498 = vsyncpa %s497, 1
    %499 = vsyncpa [#allocation13], 1
    %500 = vsyncpa [#allocation6], 1
    %s501 = scalar_lea.sflag [#allocation6], 1
    %502 = vsyncpa %s501, 1

</llo_original>
